<compile_context>
chip_gen: v7x
topology: tpu7x:2x2x1
jax: 0.10.0
libtpu: 0.0.40
codegen_flags: <defaults>
</compile_context>

<pallas_src>
import functools

import jax
import jax.numpy as jnp
from jax.experimental import pallas as pl
from jax.experimental.pallas import tpu as pltpu


# Finite stand-in for -inf for the *running-max init only* (avoids inf-inf NaN in the
# alpha rescale on the first class tile). In-kernel masking uses true -inf.
_NEG_INIT = -1e30
_MAX_BLOCK_N = 1024


def _round_up(x, m):
    return ((x + m - 1) // m) * m


def _vmem_capacity_bytes():
    try:
        return int(pltpu.get_tpu_info().vmem_capacity_bytes)
    except Exception:
        # Conservative fallback (v7x per-TensorCore size); safe on every generation.
        return 64 * 1024 * 1024


def _ce_single_tile_kernel(scores_ref, target_ref, loss_ref):
    """Whole class axis in one VMEM tile: plain (non-online) logsumexp."""
    s_raw = scores_ref[...]
    # Max on the raw dtype (exact in bf16; half the vld/VALU vs. a cast-first max).
    m = jnp.max(s_raw, axis=-1, keepdims=True).astype(jnp.float32)
    s = s_raw.astype(jnp.float32)
    t = target_ref[...].astype(jnp.float32)
    d = jnp.sum(jnp.nan_to_num(s * t), axis=-1, keepdims=True)
    lse = m + jnp.log(jnp.sum(jnp.exp(s - m), axis=-1, keepdims=True))
    loss_ref[...] = lse - d


def _ce_online_kernel(scores_ref, target_ref, loss_ref, m_ref, l_ref, d_ref,
                      *, num_classes, block_c, needs_mask):
    """Streaming (online) logsumexp over the class axis, one C-tile per grid step.

    scores_ref / target_ref : (block_n, block_c) VMEM tiles
    loss_ref                : (block_n, 1) per-row loss, written once at the last C step
    m_ref / l_ref / d_ref   : (block_n, 1) running max / running sum(exp) / target-dot
    """
    k = pl.program_id(1)

    @pl.when(k == 0)
    def _init():
        m_ref[...] = jnp.full_like(m_ref, _NEG_INIT)
        l_ref[...] = jnp.zeros_like(l_ref)
        d_ref[...] = jnp.zeros_like(d_ref)

    s_raw = scores_ref[...]
    t_raw = target_ref[...]

    if needs_mask:
        # Ragged last C tile: mask out-of-range columns in-kernel (no wrapper jnp.pad).
        col = k * block_c + jax.lax.broadcasted_iota(jnp.int32, s_raw.shape, 1)
        valid = col < num_classes
        s_raw = jnp.where(valid, s_raw, jnp.asarray(-jnp.inf, s_raw.dtype))
        t_raw = jnp.where(valid, t_raw, jnp.zeros((), t_raw.dtype))

    # Tile max on the raw dtype (exact; halves vld/VALU for bf16 inputs).
    tile_max = jnp.max(s_raw, axis=-1, keepdims=True).astype(jnp.float32)
    s = s_raw.astype(jnp.float32)
    t = t_raw.astype(jnp.float32)

    m_prev = m_ref[...]
    m_new = jnp.maximum(m_prev, tile_max)

    # Target-dot accumulation adjacent to the max pass (better s vreg reuse on v7x).
    # nan_to_num matches torch semantics exactly (0*+-inf -> 0, NaN -> 0, +-inf clamped);
    # masked lanes contribute nan_to_num(-inf * 0) == 0.
    d_ref[...] += jnp.sum(jnp.nan_to_num(s * t), axis=-1, keepdims=True)

    # Online (numerically stable) logsumexp update; masked lanes give exp(-inf - m) == 0.
    alpha = jnp.exp(m_prev - m_new)
    l_ref[...] = alpha * l_ref[...] + jnp.sum(jnp.exp(s - m_new), axis=-1, keepdims=True)
    m_ref[...] = m_new

    @pl.when(k == pl.num_programs(1) - 1)
    def _finalize():
        loss_ref[...] = m_ref[...] + jnp.log(l_ref[...]) - d_ref[...]


@functools.partial(jax.jit, static_argnames=("reduction", "block_n", "block_c"))
def cross_entropy_loss(scores, target, reduction="mean", block_n=None, block_c=None):
    """Pallas-backed equivalent of the PyTorch CrossEntropyLoss module."""
    if scores.ndim != 2 or target.shape != scores.shape:
        raise ValueError("scores and target must both be [N, C]")
    N, C = scores.shape

    # Non-float inputs: cast up-front (kernel math / masking assumes floating dtypes).
    if not jnp.issubdtype(scores.dtype, jnp.floating):
        scores = scores.astype(jnp.float32)
    if not jnp.issubdtype(target.dtype, jnp.floating):
        target = target.astype(jnp.float32)

    itemsize_s = jnp.dtype(scores.dtype).itemsize
    itemsize_t = jnp.dtype(target.dtype).itemsize
    # Row-tile alignment follows sublane packing of the narrowest dtype
    # (f32 -> 8 rows/vreg, bf16/fp16 -> 16, 8-bit -> 32).
    row_align = 8 * max(1, 4 // max(min(itemsize_s, itemsize_t), 1))

    # ---- per-generation VMEM budget (v5e/v6e: 128 MiB, v7x: 64 MiB) -----------------
    vmem_cap = _vmem_capacity_bytes()
    input_budget = vmem_cap // 2                      # double-buffered input tiles
    vmem_limit = min(input_budget + input_budget // 2, vmem_cap - (8 << 20))
    bytes_per_elem_pair = 2 * (itemsize_s + itemsize_t)   # x2 for double buffering
    elems_budget = max(input_budget // bytes_per_elem_pair, row_align * 128)

    c_full = _round_up(C, 128)
    if block_c is None:
        # bf16/fp8 inputs: double the class tile (half the bytes per element).
        block_c_pref = 8192 if max(itemsize_s, itemsize_t) <= 2 else 4096
        block_c = min(c_full, block_c_pref)
    block_c = _round_up(block_c, 128)
    num_c_tiles = -(-C // block_c)

    if block_n is None:
        block_n = min(_MAX_BLOCK_N, max(elems_budget // block_c, row_align))
    block_n = max((block_n // row_align) * row_align, row_align)
    block_n = min(block_n, _round_up(N, row_align))
    # Keep >=2 row tiles when possible so the 'parallel' row axis feeds both v7x
    # TensorCores (harmless on single-TC v5e/v6e).
    if N >= 2 * row_align:
        block_n = min(block_n, _round_up(-(-N // 2), row_align))
    block_n = max(block_n, row_align)
    num_n_tiles = -(-N // block_n)

    # Make sure the scoped VMEM limit always covers the chosen tiles (+ headroom).
    c_in_vmem = c_full if num_c_tiles == 1 else block_c
    tile_bytes = 2 * block_n * c_in_vmem * (itemsize_s + itemsize_t)
    vmem_limit = int(min(max(vmem_limit, tile_bytes + (8 << 20)), 128 << 20))

    if num_c_tiles == 1:
        # Whole class axis in one tile: specialize away the online-softmax machinery.
        per_row = pl.pallas_call(
            _ce_single_tile_kernel,
            out_shape=jax.ShapeDtypeStruct((N, 1), jnp.float32),
            grid_spec=pltpu.PrefetchScalarGridSpec(
                num_scalar_prefetch=0,
                grid=(num_n_tiles,),
                in_specs=[
                    pl.BlockSpec((block_n, C), lambda i: (i, 0)),
                    pl.BlockSpec((block_n, C), lambda i: (i, 0)),
                ],
                out_specs=pl.BlockSpec((block_n, 1), lambda i: (i, 0)),
            ),
            compiler_params=pltpu.CompilerParams(
                dimension_semantics=("parallel",),
                vmem_limit_bytes=vmem_limit,
            ),
        )(scores, target)
    else:
        needs_mask = (C % block_c) != 0
        kernel = functools.partial(
            _ce_online_kernel, num_classes=C, block_c=block_c, needs_mask=needs_mask)
        per_row = pl.pallas_call(
            kernel,
            out_shape=jax.ShapeDtypeStruct((N, 1), jnp.float32),
            grid_spec=pltpu.PrefetchScalarGridSpec(
                num_scalar_prefetch=0,
                grid=(num_n_tiles, num_c_tiles),
                in_specs=[
                    pl.BlockSpec((block_n, block_c), lambda i, k: (i, k)),
                    pl.BlockSpec((block_n, block_c), lambda i, k: (i, k)),
                ],
                out_specs=pl.BlockSpec((block_n, 1), lambda i, k: (i, 0)),
                scratch_shapes=[
                    pltpu.VMEM((block_n, 1), jnp.float32),  # running max m
                    pltpu.VMEM((block_n, 1), jnp.float32),  # running sum(exp) l
                    pltpu.VMEM((block_n, 1), jnp.float32),  # target-dot accumulator
                ],
            ),
            compiler_params=pltpu.CompilerParams(
                # Rows independent (megacore-shardable); class axis is the sequential
                # reduction axis, kept last / arbitrary.
                dimension_semantics=("parallel", "arbitrary"),
                vmem_limit_bytes=vmem_limit,
            ),
        )(scores, target)

    per_row = per_row[:, 0]
    if reduction == "mean":
        return jnp.mean(per_row)
    if reduction == "sum":
        return jnp.sum(per_row)
    if reduction == "none":
        return per_row
    raise ValueError(f"unknown reduction: {reduction}")


def _reference(scores, target, reduction="mean"):
    s = scores.astype(jnp.float32)
    t = target.astype(jnp.float32)
    lse = jax.scipy.special.logsumexp(s, axis=-1)
    dot = jnp.sum(jnp.nan_to_num(s * t), axis=-1)
    loss = lse - dot
    if reduction == "mean":
        return jnp.mean(loss)
    if reduction == "sum":
        return jnp.sum(loss)
    return loss


if __name__ == "__main__":
    key = jax.random.PRNGKey(0)
    k1, k2, k3, k4, k5, k6 = jax.random.split(key, 6)

    # Case 1: small shapes, whole class axis in one tile, 'mean' reduction.
    N1, C1 = 16, 32
    s1 = jax.random.normal(k1, (N1, C1), dtype=jnp.float32)
    t1 = jax.nn.softmax(jax.random.normal(k2, (N1, C1), dtype=jnp.float32), axis=-1)
    out1 = jax.block_until_ready(cross_entropy_loss(s1, t1, reduction="mean"))
    ref1 = _reference(s1, t1, "mean")
    assert jnp.allclose(out1, ref1, rtol=1e-5, atol=1e-5), (out1, ref1)

    # Case 2: ragged N and C with a small forced class tile -> exercises the online
    # logsumexp path and the in-kernel ragged-C masking. 'none' reduction.
    N2, C2 = 24, 600
    s2 = jax.random.normal(k3, (N2, C2), dtype=jnp.float32)
    t2 = jax.nn.softmax(jax.random.normal(k4, (N2, C2), dtype=jnp.float32), axis=-1)
    out2 = jax.block_until_ready(cross_entropy_loss(s2, t2, reduction="none", block_c=256))
    ref2 = _reference(s2, t2, "none")
    assert out2.shape == (N2,)
    assert jnp.allclose(out2, ref2, rtol=1e-5, atol=1e-5), (out2, ref2)

    # Case 3: bf16 inputs (raw-dtype tile max, 16-row sublane packing), 'sum' reduction.
    N3, C3 = 32, 300
    s3 = jax.random.normal(k5, (N3, C3), dtype=jnp.float32).astype(jnp.bfloat16)
    t3 = jax.nn.softmax(jax.random.normal(k6, (N3, C3), dtype=jnp.float32), axis=-1).astype(jnp.bfloat16)
    out3 = jax.block_until_ready(cross_entropy_loss(s3, t3, reduction="sum", block_c=128))
    ref3 = _reference(s3, t3, "sum")
    assert jnp.allclose(out3, ref3, rtol=2e-2, atol=2e-2), (out3, ref3)

    print("KERNEL_OK")
</pallas_src>

<mosaic_0001>
module attributes {stable_mosaic.version = 11 : i64} {
  func.func @_ce_single_tile_kernel(%arg0: i32, %arg1: memref<8x32xf32, #tpu.memory_space<vmem>>, %arg2: memref<8x32xf32, #tpu.memory_space<vmem>>, %arg3: memref<8x1xf32, #tpu.memory_space<vmem>>) attributes {dimension_semantics = [#tpu.dimension_semantics<parallel>], iteration_bounds = array<i64: 2>, scalar_prefetch = 0 : i64, scratch_operands = 0 : i64, tpu.core_type = #tpu.core_type<tc>, window_params = [{transform_indices = @transform_0, window_bounds = array<i64: 8, 32>}, {transform_indices = @transform_1, window_bounds = array<i64: 8, 32>}, {transform_indices = @transform_2, window_bounds = array<i64: 8, 1>}]} {
    %c0 = arith.constant 0 : index
    %c0_0 = arith.constant 0 : index
    %0 = vector.load %arg1[%c0, %c0_0] : memref<8x32xf32, #tpu.memory_space<vmem>>, vector<8x32xf32>
    %cst = arith.constant dense<0xFF800000> : vector<8xf32>
    %1 = vector.multi_reduction <maximumf>, %0, %cst [1] : vector<8x32xf32> to vector<8xf32>
    %2 = vector.shape_cast %1 : vector<8xf32> to vector<8x1xf32>
    %c0_1 = arith.constant 0 : index
    %c0_2 = arith.constant 0 : index
    %3 = vector.load %arg2[%c0_1, %c0_2] : memref<8x32xf32, #tpu.memory_space<vmem>>, vector<8x32xf32>
    %4 = arith.mulf %0, %3 : vector<8x32xf32>
    %5 = arith.cmpf one, %4, %4 : vector<8x32xf32>
    %cst_3 = arith.constant 0.000000e+00 : f32
    %6 = vector.broadcast %cst_3 : f32 to vector<8x32xf32>
    %7 = arith.select %5, %6, %4 : vector<8x32xi1>, vector<8x32xf32>
    %cst_4 = arith.constant 0x7F800000 : f32
    %8 = vector.broadcast %cst_4 : f32 to vector<8x32xf32>
    %9 = arith.cmpf oeq, %7, %8 : vector<8x32xf32>
    %cst_5 = arith.constant 3.40282347E+38 : f32
    %10 = vector.broadcast %cst_5 : f32 to vector<8x32xf32>
    %11 = arith.select %9, %10, %7 : vector<8x32xi1>, vector<8x32xf32>
    %cst_6 = arith.constant 0xFF800000 : f32
    %12 = vector.broadcast %cst_6 : f32 to vector<8x32xf32>
    %13 = arith.cmpf oeq, %11, %12 : vector<8x32xf32>
    %cst_7 = arith.constant -3.40282347E+38 : f32
    %14 = vector.broadcast %cst_7 : f32 to vector<8x32xf32>
    %15 = arith.select %13, %14, %11 : vector<8x32xi1>, vector<8x32xf32>
    %cst_8 = arith.constant dense<0.000000e+00> : vector<8xf32>
    %16 = vector.multi_reduction <add>, %15, %cst_8 [1] : vector<8x32xf32> to vector<8xf32>
    %17 = vector.shape_cast %16 : vector<8xf32> to vector<8x1xf32>
    %18 = vector.broadcast %2 : vector<8x1xf32> to vector<8x32xf32>
    %19 = arith.subf %0, %18 : vector<8x32xf32>
    %20 = math.exp %19 : vector<8x32xf32>
    %cst_9 = arith.constant dense<0.000000e+00> : vector<8xf32>
    %21 = vector.multi_reduction <add>, %20, %cst_9 [1] : vector<8x32xf32> to vector<8xf32>
    %22 = vector.shape_cast %21 : vector<8xf32> to vector<8x1xf32>
    %23 = math.log %22 : vector<8x1xf32>
    %24 = arith.addf %2, %23 : vector<8x1xf32>
    %25 = arith.subf %24, %17 : vector<8x1xf32>
    %c0_10 = arith.constant 0 : index
    %c0_11 = arith.constant 0 : index
    %26 = vector.load %arg3[%c0_10, %c0_11] : memref<8x1xf32, #tpu.memory_space<vmem>>, vector<8x1xf32>
    tpu.vector_store %arg3[%c0_10, %c0_11], %25 {strides = array<i32>} : memref<8x1xf32, #tpu.memory_space<vmem>>, vector<8x1xf32>,
    return
  }
  func.func @transform_0(%arg0: i32) -> (i32, i32) {
    %c0_i32 = arith.constant 0 : i32
    %c0_i32_0 = arith.constant 0 : i32
    return %arg0, %c0_i32 : i32, i32
  }
  func.func @transform_1(%arg0: i32) -> (i32, i32) {
    %c0_i32 = arith.constant 0 : i32
    %c0_i32_0 = arith.constant 0 : i32
    return %arg0, %c0_i32 : i32, i32
  }
  func.func @transform_2(%arg0: i32) -> (i32, i32) {
    %c0_i32 = arith.constant 0 : i32
    %c0_i32_0 = arith.constant 0 : i32
    return %arg0, %c0_i32 : i32, i32
  }
}

</mosaic_0001>

<llo_original>
// kernel: cross_entropy_loss.1
$region0: #{cross_entropy_loss.1}
  #allocation0 [shape = 'u32[]', space=smem, size = 0x4, offset = 0x4, fixed_abs, tag = 'smem constant byte address 0x4 - core index']
  #allocation1 [shape = 'u32[144,128]{1,0:T(1,128)}', space=vmem, size = 0x12000, scoped, tag = 'internal scratch']
  %s0 = inlined_call_operand.hbm [shape: f32[16,32], index: 0, kind: input, shape index: {}]
  %s1 = inlined_call_operand.hbm [shape: f32[16,32], index: 1, kind: input, shape index: {}]
  %s2 = inlined_call_operand.vmem [shape: f32[16,1], index: 2, kind: output, shape index: {}]
  %s3 = sld [smem:[#allocation0]]
  $region49: #{cross_entropy_loss.1} parent=0
    _
  %s5 = ssub.s32 1, %s3
  %s6 = scalar_select 0, %s5, %s3
  $region1: #{cross_entropy_loss.1} parent=0
    #allocation2 [shape = 'u8[8192]{0}', space=vmem, size = 0x2000, scoped, tag = 'input window, operand 0']
    #allocation3 [shape = 's32[2]{0}', space=sflag, size = 0x8, scoped, tag = 'scoped memory for cross_entropy_loss.1']
    #allocation4 [shape = 'u8[8192]{0}', space=vmem, size = 0x2000, scoped, tag = 'input window, operand 1']
    #allocation5 [shape = 's32[2]{0}', space=sflag, size = 0x8, scoped, tag = 'scoped memory for cross_entropy_loss.1']
    %7 = vsyncpa [#allocation3], 0
    %s8 = scalar_lea.sflag [#allocation3], 1
    %9 = vsyncpa %s8, 0
    %10 = vsyncpa [#allocation5], 0
    %s11 = scalar_lea.sflag [#allocation5], 1
    %12 = vsyncpa %s11, 0
    loop: start=0, step=1, limit=4
    $region2: #{cross_entropy_loss.1} parent=1 // loop_pre_header
      _
    $region3: #{cross_entropy_loss.1} parent=1 // loop_header
      %s14 = sphi 0, %s18
      %p15 = scmp.ge.s32.totalorder %s14, 4
      %s24 = sphi 0, %s26
      %s27 = sphi 0, %s24
      %s28 = sphi 0, %s27
      %s44 = sphi 0, %s28
      %s50 = sphi 0, %s52
      %s53 = sphi 0, %s50
      %s54 = sphi 0, %s53
      %s70 = sphi 0, %s54
      %s76 = sphi 0, %s78
      %s79 = sphi 0, %s76
      %s80 = sphi 0, %s79
      %s96 = sphi 0, %s80
    $region4: #{cross_entropy_loss.1} parent=1 // loop_header_branch
      %17 = sbr.rel (%p15) target = $region8
    $region5: #{cross_entropy_loss.1} parent=1 // loop_body
      %s19 = ssub.s32 %s14, 1
      %s20 = ssub.s32 %s14, 2
      %s21 = sadd.s32 %s14, 1
      %s22 = ssub.s32 %s14, %s21
      %p23 = scmp.eq.s32.totalorder %s22, 0
      %s25 = sadd.s32 %s24, 1
      %s26 = scalar_select %p23, %s24, %s25
      %p29 = pneg %p23
      %p30 = scmp.eq.s32.totalorder %s14, 1
      %p31 = por %p29, %p30
      %p32 = scmp.ne.s32.totalorder %s24, %s27
      %p33 = scmp.eq.s32.totalorder %s14, 0
      %p34 = por %p32, %p33
      %p35 = scmp.ne.s32.totalorder %s24, %s27
      %p36 = scmp.eq.s32.totalorder %s19, 1
      %p37 = por %p35, %p36
      %p38 = scmp.ne.s32.totalorder %s27, %s28
      %p39 = scmp.eq.s32.totalorder %s19, 0
      %p40 = por %p38, %p39
      %p41 = scmp.ne.s32.totalorder %s27, %s28
      %p42 = scmp.eq.s32.totalorder %s20, 1
      %p43 = por %p41, %p42
      %p45 = scmp.ne.s32.totalorder %s28, %s44
      %p46 = scmp.eq.s32.totalorder %s20, 0
      %p47 = por %p45, %p46
      %s48 = ssub.s32 %s14, %s21
      %p49 = scmp.eq.s32.totalorder %s48, 0
      %s51 = sadd.s32 %s50, 1
      %s52 = scalar_select %p49, %s50, %s51
      %p55 = pneg %p49
      %p56 = scmp.eq.s32.totalorder %s14, 1
      %p57 = por %p55, %p56
      %p58 = scmp.ne.s32.totalorder %s50, %s53
      %p59 = scmp.eq.s32.totalorder %s14, 0
      %p60 = por %p58, %p59
      %p61 = scmp.ne.s32.totalorder %s50, %s53
      %p62 = scmp.eq.s32.totalorder %s19, 1
      %p63 = por %p61, %p62
      %p64 = scmp.ne.s32.totalorder %s53, %s54
      %p65 = scmp.eq.s32.totalorder %s19, 0
      %p66 = por %p64, %p65
      %p67 = scmp.ne.s32.totalorder %s53, %s54
      %p68 = scmp.eq.s32.totalorder %s20, 1
      %p69 = por %p67, %p68
      %p71 = scmp.ne.s32.totalorder %s54, %s70
      %p72 = scmp.eq.s32.totalorder %s20, 0
      %p73 = por %p71, %p72
      %s74 = ssub.s32 %s14, %s21
      %p75 = scmp.eq.s32.totalorder %s74, 0
      %s77 = sadd.s32 %s76, 1
      %s78 = scalar_select %p75, %s76, %s77
      %p81 = pneg %p75
      %p82 = scmp.eq.s32.totalorder %s14, 1
      %p83 = por %p81, %p82
      %p84 = scmp.ne.s32.totalorder %s76, %s79
      %p85 = scmp.eq.s32.totalorder %s14, 0
      %p86 = por %p84, %p85
      %p87 = scmp.ne.s32.totalorder %s76, %s79
      %p88 = scmp.eq.s32.totalorder %s19, 1
      %p89 = por %p87, %p88
      %p90 = scmp.ne.s32.totalorder %s79, %s80
      %p91 = scmp.eq.s32.totalorder %s19, 0
      %p92 = por %p90, %p91
      %p93 = scmp.ne.s32.totalorder %s79, %s80
      %p94 = scmp.eq.s32.totalorder %s20, 1
      %p95 = por %p93, %p94
      %p97 = scmp.ne.s32.totalorder %s80, %s96
      %p98 = scmp.eq.s32.totalorder %s20, 0
      %p99 = por %p97, %p98
      %p100 = scmp.le.s32.totalorder 1, %s14
      %p101 = scmp.lt.s32.totalorder %s14, 3
      %p102 = pnand %p100, %p101
      %p103 = pneg %p102
      // Predicated region
      $region9: #{cross_entropy_loss.1} parent=5 // pred_check
        _
      $region10: #{cross_entropy_loss.1} parent=5 // pred_check_branch
        %105 = sbr.rel (%p102) target = $region12
      $region11: #{cross_entropy_loss.1} parent=5 // pred_region
        %s106 = ssub.s32 %s14, 1
      $region12: #{cross_entropy_loss.1} parent=5 // pred_fallthru
        _
      %p107 = scmp.lt.s32.totalorder %s14, 2
      // Predicated region
      $region13: #{cross_entropy_loss.1} parent=5 // pred_check
        %p108 = pneg %p107
      $region14: #{cross_entropy_loss.1} parent=5 // pred_check_branch
        %110 = sbr.rel (%p108) target = $region16
      $region15: #{cross_entropy_loss.1} parent=5 // pred_region
        // Predicated region
        $region17: #{cross_entropy_loss.1} parent=15 // pred_check
          %p111 = pneg %p34
        $region18: #{cross_entropy_loss.1} parent=15 // pred_check_branch
          %113 = sbr.rel (%p111) target = $region20
        $region19: #{cross_entropy_loss.1} parent=15 // pred_region
          %s114 = sand.u32 %s24, 1
          %s115 = scalar_lea.sflag [#allocation3], %s114
          %s116 = sand.u32 %s24, 1
          %s117 = smul.addr %s116, 8
          %s118 = scalar_lea.vmem [#allocation2], %s117
          %s120 = ssub.s32 128, 128
          %121 = vsyncadd %s115, %s120
          %s122 = smul.addr %s14, 128
          %s123 = scalar_lea.hbm %s0, %s122
          %s125 = sshll.u32 %s118, 4
          %s126 = int_to_ptr.vmem [resolvable:$true] %s125
          %128 = dma.hbm_to_vmem [thread:$0]  %s123, 128, %s126, %s115
        $region20: #{cross_entropy_loss.1} parent=15 // pred_fallthru
          _
        // Predicated region
        $region21: #{cross_entropy_loss.1} parent=15 // pred_check
          %p129 = pneg %p60
        $region22: #{cross_entropy_loss.1} parent=15 // pred_check_branch
          %131 = sbr.rel (%p129) target = $region24
        $region23: #{cross_entropy_loss.1} parent=15 // pred_region
          %s132 = sand.u32 %s50, 1
          %s133 = scalar_lea.sflag [#allocation5], %s132
          %s134 = sand.u32 %s50, 1
          %s135 = smul.addr %s134, 8
          %s136 = scalar_lea.vmem [#allocation4], %s135
          %s138 = ssub.s32 128, 128
          %139 = vsyncadd %s133, %s138
          %s140 = smul.addr %s14, 128
          %s141 = scalar_lea.hbm %s1, %s140
          %s143 = sshll.u32 %s136, 4
          %s144 = int_to_ptr.vmem [resolvable:$true] %s143
          %146 = dma.hbm_to_vmem [thread:$0]  %s141, 128, %s144, %s133
        $region24: #{cross_entropy_loss.1} parent=15 // pred_fallthru
          _
      $region16: #{cross_entropy_loss.1} parent=5 // pred_fallthru
        _
      %p147 = scmp.le.s32.totalorder 1, %s14
      %p148 = scmp.lt.s32.totalorder %s14, 3
      %p149 = pnand %p147, %p148
      %p150 = pneg %p149
      // Predicated region
      $region25: #{cross_entropy_loss.1} parent=5 // pred_check
        _
      $region26: #{cross_entropy_loss.1} parent=5 // pred_check_branch
        %152 = sbr.rel (%p149) target = $region28
      $region27: #{cross_entropy_loss.1} parent=5 // pred_region
        %s153 = ssub.s32 %s14, 1
        %s154 = sand.u32 %s27, 1
        %s155 = scalar_lea.sflag [#allocation3], %s154
        %s156 = sand.u32 %s27, 1
        %s157 = smul.addr %s156, 8
        %s158 = scalar_lea.vmem [#allocation2], %s157
        // Predicated region
        $region29: #{cross_entropy_loss.1} parent=27 // pred_check
          %p159 = pneg %p40
        $region30: #{cross_entropy_loss.1} parent=27 // pred_check_branch
          %161 = sbr.rel (%p159) target = $region32
        $region31: #{cross_entropy_loss.1} parent=27 // pred_region
          %162 = dma.done %s155, 128
        $region32: #{cross_entropy_loss.1} parent=27 // pred_fallthru
          _
        %s163 = sand.u32 %s53, 1
        %s164 = scalar_lea.sflag [#allocation5], %s163
        %s165 = sand.u32 %s53, 1
        %s166 = smul.addr %s165, 8
        %s167 = scalar_lea.vmem [#allocation4], %s166
        // Predicated region
        $region33: #{cross_entropy_loss.1} parent=27 // pred_check
          %p168 = pneg %p66
        $region34: #{cross_entropy_loss.1} parent=27 // pred_check_branch
          %170 = sbr.rel (%p168) target = $region36
        $region35: #{cross_entropy_loss.1} parent=27 // pred_region
          %171 = dma.done %s164, 128
        $region36: #{cross_entropy_loss.1} parent=27 // pred_fallthru
          _
        %s172 = sand.u32 %s27, 1
        %s173 = scalar_lea.sflag [#allocation3], %s172
        %s174 = sand.u32 %s27, 1
        %s175 = smul.addr %s174, 8
        %s176 = scalar_lea.vmem [#allocation2], %s175
        %p177 = pneg %p40
        %p178 = pneg %p37
        %s179 = sand.u32 %s53, 1
        %s180 = scalar_lea.sflag [#allocation5], %s179
        %s181 = sand.u32 %s53, 1
        %s182 = smul.addr %s181, 8
        %s183 = scalar_lea.vmem [#allocation4], %s182
        %p184 = pneg %p66
        %p185 = pneg %p63
        %p186 = pneg %p92
        %p187 = pneg %p89
        %p188 = scmp.lt.s32.totalorder %s19, 1
        %s189 = scalar_select %p188, %s19, 1
        %s190 = smul.addr %s189, 8
        %s191 = scalar_lea.vmem %s2, %s190
        %p192 = scmp.lt.s32.totalorder %s19, 1
        %s193 = scalar_select %p192, %s19, 1
        %s194 = smul.addr %s193, 8
        %s195 = scalar_lea.vmem %s2, %s194
        %v196 = vld [vmem:[%s158] sm:$0xff]
        %vm197 = vcmask 261120
        %v198 = vsel %vm197, %v196, -inf
        %199 = vmax.xlane.f32.xlu0 %v198
        %v200 = vpop.xlane.xlu0 %199
        %v201 = vld [vmem:[%s167] sm:$0xff]
        %v202 = vmul.f32 %v196, %v201
        %vm203 = vcmp.ne.f32.partialorder %v202, %v202
        %v204 = vsel %vm203, 0.0, %v202
        %vm205 = vcmp.eq.f32.partialorder %v204, inf
        %v206 = vsel %vm205, 3.4028235e+38, %v204
        %vm207 = vcmp.eq.f32.partialorder %v206, -inf
        %v208 = vsel %vm207, -3.4028235e+38, %v206
        %v209 = vsel %vm197, %v208, 0.0
        %210 = vadd.xlane.f32.xlu0 %v209
        %v211 = vpop.xlane.xlu0 %210
        %v212 = vsub.f32 %v196, %v200
        %v213 = vmul.f32 %v212, 1.442695
        %v214 = vpow.pop %v213
        %v215 = vsel %vm197, %v214, 0.0
        %216 = vadd.xlane.f32.xlu0 %v215
        %v217 = vpop.xlane.xlu0 %216
        %v218 = vlog2.pop %v217
        %v219 = vmul.f32 %v218, 0.6931472
        %v220 = vadd.f32 %v200, %v219
        %v221 = vsub.f32 %v220, %v211
        %vm222 = vcmask 7168
        %223 = vst.msk [vmem:[%s195] sm:$0xff] %vm222, %v221
        %p224 = scmp.lt.s32.totalorder %s19, 1
        %s225 = scalar_select %p224, %s19, 1
        %s226 = smul.addr %s225, 8
        %s227 = scalar_lea.vmem %s2, %s226
        // Predicated region
        $region37: #{cross_entropy_loss.1} parent=27 // pred_check
          %p228 = pneg %p89
        $region38: #{cross_entropy_loss.1} parent=27 // pred_check_branch
          %230 = sbr.rel (%p228) target = $region40
        $region39: #{cross_entropy_loss.1} parent=27 // pred_region
          _
        $region40: #{cross_entropy_loss.1} parent=27 // pred_fallthru
          _
      $region28: #{cross_entropy_loss.1} parent=5 // pred_fallthru
        _
      %p231 = scmp.le.s32.totalorder 2, %s14
      // Predicated region
      $region41: #{cross_entropy_loss.1} parent=5 // pred_check
        %p232 = pneg %p231
      $region42: #{cross_entropy_loss.1} parent=5 // pred_check_branch
        %234 = sbr.rel (%p232) target = $region44
      $region43: #{cross_entropy_loss.1} parent=5 // pred_region
        %s235 = ssub.s32 %s14, 2
        // Predicated region
        $region45: #{cross_entropy_loss.1} parent=43 // pred_check
          %p236 = pneg %p95
        $region46: #{cross_entropy_loss.1} parent=43 // pred_check_branch
          %238 = sbr.rel (%p236) target = $region48
        $region47: #{cross_entropy_loss.1} parent=43 // pred_region
          %p239 = scmp.lt.s32.totalorder %s20, 1
          %s240 = scalar_select %p239, %s20, 1
          %s241 = smul.addr %s240, 8
          %s242 = scalar_lea.vmem %s2, %s241
        $region48: #{cross_entropy_loss.1} parent=43 // pred_fallthru
          _
      $region44: #{cross_entropy_loss.1} parent=5 // pred_fallthru
        _
    $region6: #{cross_entropy_loss.1} parent=1 // loop_footer
      %s18 = sadd.s32 1, %s14
    $region7: #{cross_entropy_loss.1} parent=1 // loop_footer_branch
      %13 = sbr.rel target = $region3
    $region8: #{cross_entropy_loss.1} parent=1 // loop_exit
      _
    %243 = vsyncpa [#allocation3], 1
    %s244 = scalar_lea.sflag [#allocation3], 1
    %245 = vsyncpa %s244, 1
    %246 = vsyncpa [#allocation5], 1
    %s247 = scalar_lea.sflag [#allocation5], 1
    %248 = vsyncpa %s247, 1

</llo_original>
